<compile_context>
chip_gen: v7x
topology: tpu7x:2x2x1
jax: 0.10.0
libtpu: 0.0.40
codegen_flags: <defaults>
</compile_context>

<pallas_src>
import functools

import jax
import jax.numpy as jnp
from jax.experimental import pallas as pl
from jax.experimental.pallas import tpu as pltpu

COMPUTE_DTYPE = jnp.bfloat16


def _round_up(x, m):
    return ((x + m - 1) // m) * m


def _pick_tile(d):
    # Largest MXU/VMEM-friendly tile that divides d (d is padded to a multiple of 128).
    for t in (512, 256, 128):
        if d % t == 0:
            return t
    return d


def linear_kernel(x_ref, w_ref, b_ref, o_ref, acc_ref, *, apply_relu):
    """One (Bpad, tn) output tile, accumulated over the K grid axis.

    x_ref: (Bpad, tk) bf16   w_ref: (tk, tn) bf16   b_ref: (1, tn) f32
    o_ref: (Bpad, tn)        acc_ref: (Bpad, tn) f32 scratch
    """
    k = pl.program_id(1)

    @pl.when(k == 0)
    def _():
        acc_ref[...] = jnp.zeros_like(acc_ref)

    acc_ref[...] += jnp.dot(
        x_ref[...], w_ref[...], preferred_element_type=jnp.float32
    )

    @pl.when(k == pl.num_programs(1) - 1)
    def _():
        out = acc_ref[...] + b_ref[...]          # bias applied exactly once
        if apply_relu:
            out = jnp.maximum(out, 0.0)
        o_ref[...] = out.astype(o_ref.dtype)


def _tiled_linear(x2d, w, b, *, out_dtype, apply_relu):
    """y = act(x2d @ w + b), x2d: (Bpad, K) bf16, w: (K, N) bf16, b: (1, N) f32."""
    Bpad, K = x2d.shape
    Kw, N = w.shape
    assert K == Kw  # static shapes only
    tk = _pick_tile(K)
    tn = _pick_tile(N)
    grid = (N // tn, K // tk)

    return pl.pallas_call(
        functools.partial(linear_kernel, apply_relu=apply_relu),
        out_shape=jax.ShapeDtypeStruct((Bpad, N), out_dtype),
        grid_spec=pltpu.PrefetchScalarGridSpec(
            num_scalar_prefetch=0,
            grid=grid,
            in_specs=[
                pl.BlockSpec((Bpad, tk), lambda j, k: (0, k)),   # activations
                pl.BlockSpec((tk, tn), lambda j, k: (k, j)),     # weight tile
                pl.BlockSpec((1, tn), lambda j, k: (0, j)),      # bias tile
            ],
            out_specs=pl.BlockSpec((Bpad, tn), lambda j, k: (0, j)),
            scratch_shapes=[pltpu.VMEM((Bpad, tn), jnp.float32)],
        ),
        compiler_params=pltpu.CompilerParams(
            dimension_semantics=("parallel", "arbitrary"),
        ),
    )(x2d, w, b)


def init_params(key, seq_len, feat_dim, dtype=jnp.float32):
    """Deterministic init mirroring nn.Linear: W (out, in), b (out,)."""
    D = seq_len * feat_dim
    k1, k2, k3, k4 = jax.random.split(key, 4)
    bound = 1.0 / jnp.sqrt(D)
    w1 = jax.random.uniform(k1, (D, D), dtype, -bound, bound)
    b1 = jax.random.uniform(k2, (D,), dtype, -bound, bound)
    w2 = jax.random.uniform(k3, (D, D), dtype, -bound, bound)
    b2 = jax.random.uniform(k4, (D,), dtype, -bound, bound)
    return w1, b1, w2, b2


def prepare_params(w1, b1, w2, b2, compute_dtype=COMPUTE_DTYPE):
    """One-time preprocessing (do NOT repeat per forward call):
    transpose to (in, out), cast weights to bf16, pad D to a multiple of 128.

    Only arrays go into the returned dict so it is a clean jit-compatible pytree
    (padded sizes are recovered from the weight shapes inside the forward)."""
    D = w1.shape[0]
    Dp = _round_up(D, 128)
    pad_w = ((0, Dp - D), (0, Dp - D))

    w1p = jnp.pad(w1.T.astype(compute_dtype), pad_w)
    w2p = jnp.pad(w2.T.astype(compute_dtype), pad_w)
    b1p = jnp.pad(b1.astype(jnp.float32), (0, Dp - D)).reshape(1, Dp)
    b2p = jnp.pad(b2.astype(jnp.float32), (0, Dp - D)).reshape(1, Dp)
    return {"w1": w1p, "b1": b1p, "w2": w2p, "b2": b2p}


def mlp_layer_forward(x, params):
    """x: (bs, seq_len, feat_dim) -> (bs, seq_len, feat_dim)."""
    bs, seq_len, feat_dim = x.shape
    D = seq_len * feat_dim
    Dp = params["w1"].shape[0]          # static padded size from weight shape
    assert Dp >= D and Dp % 128 == 0    # static-only check
    Bp = max(8, _round_up(bs, 8))

    x2d = x.reshape(bs, D).astype(COMPUTE_DTYPE)
    x2d = jnp.pad(x2d, ((0, Bp - bs), (0, Dp - D)))

    h = _tiled_linear(x2d, params["w1"], params["b1"],
                      out_dtype=COMPUTE_DTYPE, apply_relu=True)
    o = _tiled_linear(h, params["w2"], params["b2"],
                      out_dtype=x.dtype, apply_relu=False)

    return o[:bs, :D].reshape(bs, seq_len, feat_dim)


def reference_forward(x, w1, b1, w2, b2, compute_dtype=COMPUTE_DTYPE):
    """Pure-JAX reference using the same bf16-weight / f32-accumulate recipe."""
    bs, seq_len, feat_dim = x.shape
    xf = x.reshape(bs, -1).astype(compute_dtype)
    h = jnp.dot(xf, w1.T.astype(compute_dtype),
                preferred_element_type=jnp.float32) + b1.astype(jnp.float32)
    h = jnp.maximum(h, 0.0).astype(compute_dtype)
    o = jnp.dot(h, w2.T.astype(compute_dtype),
                preferred_element_type=jnp.float32) + b2.astype(jnp.float32)
    return o.astype(x.dtype).reshape(bs, seq_len, feat_dim)


if __name__ == "__main__":
    batch, seq_len, feat_dim = 2, 8, 16   # D = 128
    key = jax.random.PRNGKey(0)
    kx, kp = jax.random.split(key)

    x = jax.random.normal(kx, (batch, seq_len, feat_dim), jnp.float32)
    w1, b1, w2, b2 = init_params(kp, seq_len, feat_dim)

    params = prepare_params(w1, b1, w2, b2)          # one-time: transpose + bf16 + pad
    fwd = jax.jit(mlp_layer_forward)

    out = fwd(x, params)
    out = jax.block_until_ready(out)

    ref = reference_forward(x, w1, b1, w2, b2)
    assert out.shape == (batch, seq_len, feat_dim)
    assert jnp.allclose(out, ref, atol=2e-2, rtol=2e-2), (
        float(jnp.max(jnp.abs(out - ref))))

    print("KERNEL_OK")
</pallas_src>

<mosaic_0001>
module attributes {stable_mosaic.version = 11 : i64} {
  func.func @linear_kernel(%arg0: i32, %arg1: i32, %arg2: memref<8x128xbf16, #tpu.memory_space<vmem>>, %arg3: memref<128x128xbf16, #tpu.memory_space<vmem>>, %arg4: memref<1x128xf32, #tpu.memory_space<vmem>>, %arg5: memref<8x128xbf16, #tpu.memory_space<vmem>>, %arg6: memref<8x128xf32, #tpu.memory_space<vmem>>) attributes {dimension_semantics = [#tpu.dimension_semantics<parallel>, #tpu.dimension_semantics<arbitrary>], iteration_bounds = array<i64: 1, 1>, scalar_prefetch = 0 : i64, scratch_operands = 1 : i64, tpu.core_type = #tpu.core_type<tc>, window_params = [{transform_indices = @transform_0, window_bounds = array<i64: 8, 128>}, {transform_indices = @transform_1, window_bounds = array<i64: 128, 128>}, {transform_indices = @transform_2, window_bounds = array<i64: 1, 128>}, {transform_indices = @transform_3, window_bounds = array<i64: 8, 128>}]} {
    %c0_i32 = arith.constant 0 : i32
    %0 = arith.cmpi eq, %arg1, %c0_i32 : i32
    %1 = arith.extui %0 : i1 to i32
    %c0_i32_0 = arith.constant 0 : i32
    %2 = arith.cmpi ne, %1, %c0_i32_0 : i32
    scf.if %2 {
      %cst_10 = arith.constant 0.000000e+00 : f32
      %12 = vector.broadcast %cst_10 : f32 to vector<8x128xf32>
      %c0_11 = arith.constant 0 : index
      %c0_12 = arith.constant 0 : index
      %13 = vector.load %arg6[%c0_11, %c0_12] : memref<8x128xf32, #tpu.memory_space<vmem>>, vector<8x128xf32>
      tpu.vector_store %arg6[%c0_11, %c0_12], %12 {strides = array<i32>} : memref<8x128xf32, #tpu.memory_space<vmem>>, vector<8x128xf32>,
    } else {
    }
    %c0 = arith.constant 0 : index
    %c0_1 = arith.constant 0 : index
    %3 = vector.load %arg6[%c0, %c0_1] : memref<8x128xf32, #tpu.memory_space<vmem>>, vector<8x128xf32>
    %c0_2 = arith.constant 0 : index
    %c0_3 = arith.constant 0 : index
    %4 = vector.load %arg2[%c0_2, %c0_3] : memref<8x128xbf16, #tpu.memory_space<vmem>>, vector<8x128xbf16>
    %c0_4 = arith.constant 0 : index
    %c0_5 = arith.constant 0 : index
    %5 = vector.load %arg3[%c0_4, %c0_5] : memref<128x128xbf16, #tpu.memory_space<vmem>>, vector<128x128xbf16>
    %cst = arith.constant dense<0.000000e+00> : vector<8x128xf32>
    %6 = tpu.matmul %4, %5, %cst {dimension_numbers = #tpu.dot_dimension_numbers<[1], [0], [0], [1], [0, 0, 1, 1], [], []>} : vector<8x128xbf16>, vector<128x128xbf16>, vector<8x128xf32> -> vector<8x128xf32>
    %7 = arith.addf %3, %6 : vector<8x128xf32>
    %c0_6 = arith.constant 0 : index
    %c0_7 = arith.constant 0 : index
    %8 = vector.load %arg6[%c0_6, %c0_7] : memref<8x128xf32, #tpu.memory_space<vmem>>, vector<8x128xf32>
    tpu.vector_store %arg6[%c0_6, %c0_7], %7 {strides = array<i32>} : memref<8x128xf32, #tpu.memory_space<vmem>>, vector<8x128xf32>,
    %c0_i32_8 = arith.constant 0 : i32
    %9 = arith.cmpi eq, %arg1, %c0_i32_8 : i32
    %10 = arith.extui %9 : i1 to i32
    %c0_i32_9 = arith.constant 0 : i32
    %11 = arith.cmpi ne, %10, %c0_i32_9 : i32
    scf.if %11 {
      %c0_10 = arith.constant 0 : index
      %c0_11 = arith.constant 0 : index
      %12 = vector.load %arg6[%c0_10, %c0_11] : memref<8x128xf32, #tpu.memory_space<vmem>>, vector<8x128xf32>
      %c0_12 = arith.constant 0 : index
      %c0_13 = arith.constant 0 : index
      %13 = vector.load %arg4[%c0_12, %c0_13] : memref<1x128xf32, #tpu.memory_space<vmem>>, vector<1x128xf32>
      %14 = vector.broadcast %13 : vector<1x128xf32> to vector<8x128xf32>
      %15 = arith.addf %12, %14 : vector<8x128xf32>
      %cst_14 = arith.constant 0.000000e+00 : f32
      %16 = vector.broadcast %cst_14 : f32 to vector<8x128xf32>
      %17 = arith.maximumf %15, %16 : vector<8x128xf32>
      %18 = arith.truncf %17 : vector<8x128xf32> to vector<8x128xbf16>
      %c0_15 = arith.constant 0 : index
      %c0_16 = arith.constant 0 : index
      %19 = vector.load %arg5[%c0_15, %c0_16] : memref<8x128xbf16, #tpu.memory_space<vmem>>, vector<8x128xbf16>
      tpu.vector_store %arg5[%c0_15, %c0_16], %18 {strides = array<i32>} : memref<8x128xbf16, #tpu.memory_space<vmem>>, vector<8x128xbf16>,
    } else {
    }
    return
  }
  func.func @transform_0(%arg0: i32, %arg1: i32) -> (i32, i32) {
    %c0_i32 = arith.constant 0 : i32
    %c0_i32_0 = arith.constant 0 : i32
    return %c0_i32, %arg1 : i32, i32
  }
  func.func @transform_1(%arg0: i32, %arg1: i32) -> (i32, i32) {
    %c0_i32 = arith.constant 0 : i32
    return %arg1, %arg0 : i32, i32
  }
  func.func @transform_2(%arg0: i32, %arg1: i32) -> (i32, i32) {
    %c0_i32 = arith.constant 0 : i32
    %c0_i32_0 = arith.constant 0 : i32
    return %c0_i32, %arg0 : i32, i32
  }
  func.func @transform_3(%arg0: i32, %arg1: i32) -> (i32, i32) {
    %c0_i32 = arith.constant 0 : i32
    %c0_i32_0 = arith.constant 0 : i32
    return %c0_i32, %arg0 : i32, i32
  }
}

module attributes {stable_mosaic.version = 11 : i64} {
  func.func @linear_kernel(%arg0: i32, %arg1: i32, %arg2: memref<8x128xbf16, #tpu.memory_space<vmem>>, %arg3: memref<128x128xbf16, #tpu.memory_space<vmem>>, %arg4: memref<1x128xf32, #tpu.memory_space<vmem>>, %arg5: memref<8x128xf32, #tpu.memory_space<vmem>>, %arg6: memref<8x128xf32, #tpu.memory_space<vmem>>) attributes {dimension_semantics = [#tpu.dimension_semantics<parallel>, #tpu.dimension_semantics<arbitrary>], iteration_bounds = array<i64: 1, 1>, scalar_prefetch = 0 : i64, scratch_operands = 1 : i64, tpu.core_type = #tpu.core_type<tc>, window_params = [{transform_indices = @transform_0, window_bounds = array<i64: 8, 128>}, {transform_indices = @transform_1, window_bounds = array<i64: 128, 128>}, {transform_indices = @transform_2, window_bounds = array<i64: 1, 128>}, {transform_indices = @transform_3, window_bounds = array<i64: 8, 128>}]} {
    %c0_i32 = arith.constant 0 : i32
    %0 = arith.cmpi eq, %arg1, %c0_i32 : i32
    %1 = arith.extui %0 : i1 to i32
    %c0_i32_0 = arith.constant 0 : i32
    %2 = arith.cmpi ne, %1, %c0_i32_0 : i32
    scf.if %2 {
      %cst_10 = arith.constant 0.000000e+00 : f32
      %12 = vector.broadcast %cst_10 : f32 to vector<8x128xf32>
      %c0_11 = arith.constant 0 : index
      %c0_12 = arith.constant 0 : index
      %13 = vector.load %arg6[%c0_11, %c0_12] : memref<8x128xf32, #tpu.memory_space<vmem>>, vector<8x128xf32>
      tpu.vector_store %arg6[%c0_11, %c0_12], %12 {strides = array<i32>} : memref<8x128xf32, #tpu.memory_space<vmem>>, vector<8x128xf32>,
    } else {
    }
    %c0 = arith.constant 0 : index
    %c0_1 = arith.constant 0 : index
    %3 = vector.load %arg6[%c0, %c0_1] : memref<8x128xf32, #tpu.memory_space<vmem>>, vector<8x128xf32>
    %c0_2 = arith.constant 0 : index
    %c0_3 = arith.constant 0 : index
    %4 = vector.load %arg2[%c0_2, %c0_3] : memref<8x128xbf16, #tpu.memory_space<vmem>>, vector<8x128xbf16>
    %c0_4 = arith.constant 0 : index
    %c0_5 = arith.constant 0 : index
    %5 = vector.load %arg3[%c0_4, %c0_5] : memref<128x128xbf16, #tpu.memory_space<vmem>>, vector<128x128xbf16>
    %cst = arith.constant dense<0.000000e+00> : vector<8x128xf32>
    %6 = tpu.matmul %4, %5, %cst {dimension_numbers = #tpu.dot_dimension_numbers<[1], [0], [0], [1], [0, 0, 1, 1], [], []>} : vector<8x128xbf16>, vector<128x128xbf16>, vector<8x128xf32> -> vector<8x128xf32>
    %7 = arith.addf %3, %6 : vector<8x128xf32>
    %c0_6 = arith.constant 0 : index
    %c0_7 = arith.constant 0 : index
    %8 = vector.load %arg6[%c0_6, %c0_7] : memref<8x128xf32, #tpu.memory_space<vmem>>, vector<8x128xf32>
    tpu.vector_store %arg6[%c0_6, %c0_7], %7 {strides = array<i32>} : memref<8x128xf32, #tpu.memory_space<vmem>>, vector<8x128xf32>,
    %c0_i32_8 = arith.constant 0 : i32
    %9 = arith.cmpi eq, %arg1, %c0_i32_8 : i32
    %10 = arith.extui %9 : i1 to i32
    %c0_i32_9 = arith.constant 0 : i32
    %11 = arith.cmpi ne, %10, %c0_i32_9 : i32
    scf.if %11 {
      %c0_10 = arith.constant 0 : index
      %c0_11 = arith.constant 0 : index
      %12 = vector.load %arg6[%c0_10, %c0_11] : memref<8x128xf32, #tpu.memory_space<vmem>>, vector<8x128xf32>
      %c0_12 = arith.constant 0 : index
      %c0_13 = arith.constant 0 : index
      %13 = vector.load %arg4[%c0_12, %c0_13] : memref<1x128xf32, #tpu.memory_space<vmem>>, vector<1x128xf32>
      %14 = vector.broadcast %13 : vector<1x128xf32> to vector<8x128xf32>
      %15 = arith.addf %12, %14 : vector<8x128xf32>
      %c0_14 = arith.constant 0 : index
      %c0_15 = arith.constant 0 : index
      %16 = vector.load %arg5[%c0_14, %c0_15] : memref<8x128xf32, #tpu.memory_space<vmem>>, vector<8x128xf32>
      tpu.vector_store %arg5[%c0_14, %c0_15], %15 {strides = array<i32>} : memref<8x128xf32, #tpu.memory_space<vmem>>, vector<8x128xf32>,
    } else {
    }
    return
  }
  func.func @transform_0(%arg0: i32, %arg1: i32) -> (i32, i32) {
    %c0_i32 = arith.constant 0 : i32
    %c0_i32_0 = arith.constant 0 : i32
    return %c0_i32, %arg1 : i32, i32
  }
  func.func @transform_1(%arg0: i32, %arg1: i32) -> (i32, i32) {
    %c0_i32 = arith.constant 0 : i32
    return %arg1, %arg0 : i32, i32
  }
  func.func @transform_2(%arg0: i32, %arg1: i32) -> (i32, i32) {
    %c0_i32 = arith.constant 0 : i32
    %c0_i32_0 = arith.constant 0 : i32
    return %c0_i32, %arg0 : i32, i32
  }
  func.func @transform_3(%arg0: i32, %arg1: i32) -> (i32, i32) {
    %c0_i32 = arith.constant 0 : i32
    %c0_i32_0 = arith.constant 0 : i32
    return %c0_i32, %arg0 : i32, i32
  }
}

</mosaic_0001>

<llo_original>
// kernel: mlp_layer_forward.3
$region0: #{mlp_layer_forward.3}
  #allocation0 [shape = 'u32[]', space=smem, size = 0x4, offset = 0x4, fixed_abs, tag = 'smem constant byte address 0x4 - core index']
  #allocation1 [shape = 'u32[144,128]{1,0:T(1,128)}', space=vmem, size = 0x12000, scoped, tag = 'internal scratch']
  #allocation2 [shape = 'f32[8,128]{1,0:T(8,128)}', space=vmem, size = 0x1000, scoped, tag = 'scratch operand']
  %s0 = inlined_call_operand.vmem [shape: bf16[8,128], index: 0, kind: input, shape index: {}]
  %s1 = inlined_call_operand.vmem [shape: bf16[128,128], index: 1, kind: input, shape index: {}]
  %s2 = inlined_call_operand.vmem [shape: f32[1,128], index: 2, kind: input, shape index: {}]
  %s3 = inlined_call_operand.vmem [shape: f32[8,128], index: 3, kind: output, shape index: {}]
  %s4 = sld [smem:[#allocation0]]
  $region30: #{mlp_layer_forward.3} parent=0
    _
  %s6 = ssub.s32 1, %s4
  %s7 = scalar_select 0, %s6, %s4
  // Predicated region
  $region2: #{mlp_layer_forward.3} parent=0 // pred_check
    _
  $region3: #{mlp_layer_forward.3} parent=0 // pred_check_branch
    %9 = sbr.rel (0) target = $region5
  $region4: #{mlp_layer_forward.3} parent=0 // pred_region
    _
  $region5: #{mlp_layer_forward.3} parent=0 // pred_fallthru
    _
  // Predicated region
  $region6: #{mlp_layer_forward.3} parent=0 // pred_check
    _
  $region7: #{mlp_layer_forward.3} parent=0 // pred_check_branch
    %11 = sbr.rel (0) target = $region9
  $region8: #{mlp_layer_forward.3} parent=0 // pred_region
    _
  $region9: #{mlp_layer_forward.3} parent=0 // pred_fallthru
    _
  // Predicated region
  $region10: #{mlp_layer_forward.3} parent=0 // pred_check
    _
  $region11: #{mlp_layer_forward.3} parent=0 // pred_check_branch
    %13 = sbr.rel (0) target = $region13
  $region12: #{mlp_layer_forward.3} parent=0 // pred_region
    _
  $region13: #{mlp_layer_forward.3} parent=0 // pred_fallthru
    _
  %p15 = scmp.eq.s32.totalorder 0, 0
  // Predicated region
  $region14: #{mlp_layer_forward.3} parent=0 // pred_check
    %p16 = pneg %p15
  $region15: #{mlp_layer_forward.3} parent=0 // pred_check_branch
    %18 = sbr.rel (%p16) target = $region17
  $region16: #{mlp_layer_forward.3} parent=0 // pred_region
    %19 = vst [vmem:[#allocation2] sm:$0xff] 0.0
  $region17: #{mlp_layer_forward.3} parent=0 // pred_fallthru
    _
  %v20 = vld [vmem:[#allocation2] sm:$0xff]
  %v21 = vld [vmem:[%s0] sm:$0xf]
  %v22 = vld [vmem:[%s1] sm:$0xf]
  %v23 = vld [vmem:[%s1 + $0x4] sm:$0xf]
  %v24 = vld [vmem:[%s1 + $0x8] sm:$0xf]
  %v25 = vld [vmem:[%s1 + $0xc] sm:$0xf]
  %v26 = vld [vmem:[%s1 + $0x10] sm:$0xf]
  %v27 = vld [vmem:[%s1 + $0x14] sm:$0xf]
  %v28 = vld [vmem:[%s1 + $0x18] sm:$0xf]
  %v29 = vld [vmem:[%s1 + $0x1c] sm:$0xf]
  %v30 = vld [vmem:[%s1 + $0x20] sm:$0xf]
  %v31 = vld [vmem:[%s1 + $0x24] sm:$0xf]
  %v32 = vld [vmem:[%s1 + $0x28] sm:$0xf]
  %v33 = vld [vmem:[%s1 + $0x2c] sm:$0xf]
  %v34 = vld [vmem:[%s1 + $0x30] sm:$0xf]
  %v35 = vld [vmem:[%s1 + $0x34] sm:$0xf]
  %v36 = vld [vmem:[%s1 + $0x38] sm:$0xf]
  %v37 = vld [vmem:[%s1 + $0x3c] sm:$0xf]
  %v54 = vunpack.c.l.b16 %v22
  %v55 = vunpack.c.l.b16 %v23
  %v56 = vunpack.c.l.b16 %v24
  %v57 = vunpack.c.l.b16 %v25
  %v58 = vunpack.c.l.b16 %v26
  %v59 = vunpack.c.l.b16 %v27
  %v60 = vunpack.c.l.b16 %v28
  %v61 = vunpack.c.l.b16 %v29
  %v62 = vunpack.c.l.b16 %v30
  %v63 = vunpack.c.l.b16 %v31
  %v64 = vunpack.c.l.b16 %v32
  %v65 = vunpack.c.l.b16 %v33
  %v66 = vunpack.c.l.b16 %v34
  %v67 = vunpack.c.l.b16 %v35
  %v68 = vunpack.c.l.b16 %v36
  %v69 = vunpack.c.l.b16 %v37
  %v70 = vpack.c.b16 %v55, %v54
  %v71 = vpack.c.b16 %v57, %v56
  %v72 = vpack.c.b16 %v59, %v58
  %v73 = vpack.c.b16 %v61, %v60
  %v74 = vpack.c.b16 %v63, %v62
  %v75 = vpack.c.b16 %v65, %v64
  %v76 = vpack.c.b16 %v67, %v66
  %v77 = vpack.c.b16 %v69, %v68
  %86 = vmatprep.subr.bf16.mxu0 0
  %87 = vmatpush1.bf16.msra.mxu0 %v70
  %88 = vmatprep.subr.bf16.mxu0 0
  %89 = vmatpush1.bf16.msra.mxu0 %v71
  %90 = vmatprep.subr.bf16.mxu0 0
  %91 = vmatpush1.bf16.msra.mxu0 %v72
  %92 = vmatprep.subr.bf16.mxu0 0
  %93 = vmatpush1.bf16.msra.mxu0 %v73
  %94 = vmatprep.subr.bf16.mxu0 0
  %95 = vmatpush1.bf16.msra.mxu0 %v74
  %96 = vmatprep.subr.bf16.mxu0 0
  %97 = vmatpush1.bf16.msra.mxu0 %v75
  %98 = vmatprep.subr.bf16.mxu0 0
  %99 = vmatpush1.bf16.msra.mxu0 %v76
  %100 = vmatprep.subr.bf16.mxu0 0
  %101 = vmatpush1.bf16.msra.mxu0 %v77
  %102 = vmatprep.subr.bf16.mxu0 0
  %103 = vmatpush1.bf16.msra.mxu0 0
  %104 = vmatprep.subr.bf16.mxu0 0
  %105 = vmatpush1.bf16.msra.mxu0 0
  %106 = vmatprep.subr.bf16.mxu0 0
  %107 = vmatpush1.bf16.msra.mxu0 0
  %108 = vmatprep.subr.bf16.mxu0 0
  %109 = vmatpush1.bf16.msra.mxu0 0
  %110 = vmatprep.subr.bf16.mxu0 0
  %111 = vmatpush1.bf16.msra.mxu0 0
  %112 = vmatprep.subr.bf16.mxu0 0
  %113 = vmatpush1.bf16.msra.mxu0 0
  %114 = vmatprep.subr.bf16.mxu0 0
  %115 = vmatpush1.bf16.msra.mxu0 0
  %116 = vmatprep.subr.bf16.mxu0 0
  %117 = vmatpush1.bf16.msra.mxu0 0
  %118 = vmatprep.mubr.bf16.mxu0 0
  %119 = vmatmul.mubr.bf16.gmra.mrb[0].mxu0 %v21
  %v120 = vpop.f32.mrb[0].mxu0
  %v121 = vadd.f32 0.0, %v120
  %v122 = vpop.f32.mrb[0].mxu0
  %v123 = vpop.f32.mrb[0].mxu0
  %v124 = vpop.f32.mrb[0].mxu0
  %125 = vdwg.mxu0
  %v126 = vadd.f32 %v20, %v121
  %127 = vst [vmem:[#allocation2] sm:$0xff] %v126
  // Predicated region
  $region18: #{mlp_layer_forward.3} parent=0 // pred_check
    %p128 = pneg %p15
  $region19: #{mlp_layer_forward.3} parent=0 // pred_check_branch
    %130 = sbr.rel (%p128) target = $region21
  $region20: #{mlp_layer_forward.3} parent=0 // pred_region
    %v131 = vld [vmem:[#allocation2] sm:$0xff]
    %v132 = vld [vmem:[%s2] sm:$0x1]
    %v134 = vlaneseq
    %v135 = vshrl.u32 %v134, 7
    %v136 = vsub.s32 0, %v135
    %v137 = vrot.slane %v132, %v136
    %v139 = vadd.f32 %v131, %v137
    %140 = vst [vmem:[%s3] sm:$0xff] %v139
  $region21: #{mlp_layer_forward.3} parent=0 // pred_fallthru
    _
  // Predicated region
  $region22: #{mlp_layer_forward.3} parent=0 // pred_check
    _
  $region23: #{mlp_layer_forward.3} parent=0 // pred_check_branch
    %142 = sbr.rel (0) target = $region25
  $region24: #{mlp_layer_forward.3} parent=0 // pred_region
    _
  $region25: #{mlp_layer_forward.3} parent=0 // pred_fallthru
    _
  // Predicated region
  $region26: #{mlp_layer_forward.3} parent=0 // pred_check
    _
  $region27: #{mlp_layer_forward.3} parent=0 // pred_check_branch
    %144 = sbr.rel (0) target = $region29
  $region28: #{mlp_layer_forward.3} parent=0 // pred_region
    _
  $region29: #{mlp_layer_forward.3} parent=0 // pred_fallthru
    _

// kernel: mlp_layer_forward.2
$region0: #{mlp_layer_forward.2}
  #allocation0 [shape = 'u32[]', space=smem, size = 0x4, offset = 0x4, fixed_abs, tag = 'smem constant byte address 0x4 - core index']
  #allocation1 [shape = 'u32[144,128]{1,0:T(1,128)}', space=vmem, size = 0x12000, scoped, tag = 'internal scratch']
  #allocation2 [shape = 'f32[8,128]{1,0:T(8,128)}', space=vmem, size = 0x1000, scoped, tag = 'scratch operand']
  %s0 = inlined_call_operand.vmem [shape: bf16[8,128], index: 0, kind: input, shape index: {}]
  %s1 = inlined_call_operand.hbm [shape: bf16[128,128], index: 1, kind: input, shape index: {}]
  %s2 = inlined_call_operand.hbm [shape: f32[1,128], index: 2, kind: input, shape index: {}]
  %s3 = inlined_call_operand.vmem [shape: bf16[8,128], index: 3, kind: output, shape index: {}]
  %s4 = sld [smem:[#allocation0]]
  $region38: #{mlp_layer_forward.2} parent=0
    _
  %s6 = ssub.s32 1, %s4
  %s7 = scalar_select 0, %s6, %s4
  $region1: #{mlp_layer_forward.2} parent=0
    #allocation3 [shape = 'u8[32768]{0}', space=vmem, size = 0x8000, scoped, tag = 'input window, operand 1, single buffered']
    #allocation4 [shape = 's32[1]{0}', space=sflag, size = 0x4, scoped, tag = 'scoped memory for mlp_layer_forward.2']
    #allocation5 [shape = 'u8[512]{0}', space=vmem, size = 0x400, scoped, tag = 'input window, operand 2, single buffered']
    #allocation6 [shape = 's32[1]{0}', space=sflag, size = 0x4, scoped, tag = 'scoped memory for mlp_layer_forward.2']
    %8 = vsyncpa [#allocation4], 0
    %9 = vsyncpa [#allocation6], 0
    // Predicated region
    $region2: #{mlp_layer_forward.2} parent=1 // pred_check
      _
    $region3: #{mlp_layer_forward.2} parent=1 // pred_check_branch
      %11 = sbr.rel (0) target = $region5
    $region4: #{mlp_layer_forward.2} parent=1 // pred_region
      _
    $region5: #{mlp_layer_forward.2} parent=1 // pred_fallthru
      _
    // Predicated region
    $region6: #{mlp_layer_forward.2} parent=1 // pred_check
      _
    $region7: #{mlp_layer_forward.2} parent=1 // pred_check_branch
      %13 = sbr.rel (0) target = $region9
    $region8: #{mlp_layer_forward.2} parent=1 // pred_region
      %s15 = ssub.s32 1024, 1024
      %16 = vsyncadd [#allocation4], %s15
      %s17 = sshll.u32 [#allocation3], 4
      %s18 = int_to_ptr.vmem [resolvable:$true] %s17
      %23 = dma.hbm_to_vmem [thread:$0]  %s1, 1024, %s18, [#allocation4], 64, 64, 4
    $region9: #{mlp_layer_forward.2} parent=1 // pred_fallthru
      _
    // Predicated region
    $region10: #{mlp_layer_forward.2} parent=1 // pred_check
      _
    $region11: #{mlp_layer_forward.2} parent=1 // pred_check_branch
      %25 = sbr.rel (0) target = $region13
    $region12: #{mlp_layer_forward.2} parent=1 // pred_region
      %s27 = ssub.s32 16, 16
      %28 = vsyncadd [#allocation6], %s27
      %s30 = sshll.u32 [#allocation5], 4
      %s31 = int_to_ptr.vmem [resolvable:$true] %s30
      %33 = dma.hbm_to_vmem [thread:$0]  %s2, 16, %s31, [#allocation6]
    $region13: #{mlp_layer_forward.2} parent=1 // pred_fallthru
      _
    // Predicated region
    $region14: #{mlp_layer_forward.2} parent=1 // pred_check
      _
    $region15: #{mlp_layer_forward.2} parent=1 // pred_check_branch
      %35 = sbr.rel (0) target = $region17
    $region16: #{mlp_layer_forward.2} parent=1 // pred_region
      %36 = dma.done [#allocation4], 1024
    $region17: #{mlp_layer_forward.2} parent=1 // pred_fallthru
      _
    // Predicated region
    $region18: #{mlp_layer_forward.2} parent=1 // pred_check
      _
    $region19: #{mlp_layer_forward.2} parent=1 // pred_check_branch
      %38 = sbr.rel (0) target = $region21
    $region20: #{mlp_layer_forward.2} parent=1 // pred_region
      %39 = dma.done [#allocation6], 16
    $region21: #{mlp_layer_forward.2} parent=1 // pred_fallthru
      _
    %p41 = scmp.eq.s32.totalorder 0, 0
    // Predicated region
    $region22: #{mlp_layer_forward.2} parent=1 // pred_check
      %p42 = pneg %p41
    $region23: #{mlp_layer_forward.2} parent=1 // pred_check_branch
      %44 = sbr.rel (%p42) target = $region25
    $region24: #{mlp_layer_forward.2} parent=1 // pred_region
      %45 = vst [vmem:[#allocation2] sm:$0xff] 0.0
    $region25: #{mlp_layer_forward.2} parent=1 // pred_fallthru
      _
    %v46 = vld [vmem:[#allocation2] sm:$0xff]
    %v47 = vld [vmem:[%s0] sm:$0xf]
    %v48 = vld [vmem:[#allocation3] sm:$0xf]
    %v49 = vld [vmem:[#allocation3 + $0x4] sm:$0xf]
    %v50 = vld [vmem:[#allocation3 + $0x8] sm:$0xf]
    %v51 = vld [vmem:[#allocation3 + $0xc] sm:$0xf]
    %v52 = vld [vmem:[#allocation3 + $0x10] sm:$0xf]
    %v53 = vld [vmem:[#allocation3 + $0x14] sm:$0xf]
    %v54 = vld [vmem:[#allocation3 + $0x18] sm:$0xf]
    %v55 = vld [vmem:[#allocation3 + $0x1c] sm:$0xf]
    %v56 = vld [vmem:[#allocation3 + $0x20] sm:$0xf]
    %v57 = vld [vmem:[#allocation3 + $0x24] sm:$0xf]
    %v58 = vld [vmem:[#allocation3 + $0x28] sm:$0xf]
    %v59 = vld [vmem:[#allocation3 + $0x2c] sm:$0xf]
    %v60 = vld [vmem:[#allocation3 + $0x30] sm:$0xf]
    %v61 = vld [vmem:[#allocation3 + $0x34] sm:$0xf]
    %v62 = vld [vmem:[#allocation3 + $0x38] sm:$0xf]
    %v63 = vld [vmem:[#allocation3 + $0x3c] sm:$0xf]
    %v80 = vunpack.c.l.b16 %v48
    %v81 = vunpack.c.l.b16 %v49
    %v82 = vunpack.c.l.b16 %v50
    %v83 = vunpack.c.l.b16 %v51
    %v84 = vunpack.c.l.b16 %v52
    %v85 = vunpack.c.l.b16 %v53
    %v86 = vunpack.c.l.b16 %v54
    %v87 = vunpack.c.l.b16 %v55
    %v88 = vunpack.c.l.b16 %v56
    %v89 = vunpack.c.l.b16 %v57
    %v90 = vunpack.c.l.b16 %v58
    %v91 = vunpack.c.l.b16 %v59
    %v92 = vunpack.c.l.b16 %v60
    %v93 = vunpack.c.l.b16 %v61
    %v94 = vunpack.c.l.b16 %v62
    %v95 = vunpack.c.l.b16 %v63
    %v96 = vpack.c.b16 %v81, %v80
    %v97 = vpack.c.b16 %v83, %v82
    %v98 = vpack.c.b16 %v85, %v84
    %v99 = vpack.c.b16 %v87, %v86
    %v100 = vpack.c.b16 %v89, %v88
    %v101 = vpack.c.b16 %v91, %v90
    %v102 = vpack.c.b16 %v93, %v92
    %v103 = vpack.c.b16 %v95, %v94
    %112 = vmatprep.subr.bf16.mxu0 0
    %113 = vmatpush1.bf16.msra.mxu0 %v96
    %114 = vmatprep.subr.bf16.mxu0 0
    %115 = vmatpush1.bf16.msra.mxu0 %v97
    %116 = vmatprep.subr.bf16.mxu0 0
    %117 = vmatpush1.bf16.msra.mxu0 %v98
    %118 = vmatprep.subr.bf16.mxu0 0
    %119 = vmatpush1.bf16.msra.mxu0 %v99
    %120 = vmatprep.subr.bf16.mxu0 0
    %121 = vmatpush1.bf16.msra.mxu0 %v100
    %122 = vmatprep.subr.bf16.mxu0 0
    %123 = vmatpush1.bf16.msra.mxu0 %v101
    %124 = vmatprep.subr.bf16.mxu0 0
    %125 = vmatpush1.bf16.msra.mxu0 %v102
    %126 = vmatprep.subr.bf16.mxu0 0
    %127 = vmatpush1.bf16.msra.mxu0 %v103
    %128 = vmatprep.subr.bf16.mxu0 0
    %129 = vmatpush1.bf16.msra.mxu0 0
    %130 = vmatprep.subr.bf16.mxu0 0
    %131 = vmatpush1.bf16.msra.mxu0 0
    %132 = vmatprep.subr.bf16.mxu0 0
    %133 = vmatpush1.bf16.msra.mxu0 0
    %134 = vmatprep.subr.bf16.mxu0 0
    %135 = vmatpush1.bf16.msra.mxu0 0
    %136 = vmatprep.subr.bf16.mxu0 0
    %137 = vmatpush1.bf16.msra.mxu0 0
    %138 = vmatprep.subr.bf16.mxu0 0
    %139 = vmatpush1.bf16.msra.mxu0 0
    %140 = vmatprep.subr.bf16.mxu0 0
    %141 = vmatpush1.bf16.msra.mxu0 0
    %142 = vmatprep.subr.bf16.mxu0 0
    %143 = vmatpush1.bf16.msra.mxu0 0
    %144 = vmatprep.mubr.bf16.mxu0 0
    %145 = vmatmul.mubr.bf16.gmra.mrb[0].mxu0 %v47
    %v146 = vpop.f32.mrb[0].mxu0
    %v147 = vadd.f32 0.0, %v146
    %v148 = vpop.f32.mrb[0].mxu0
    %v149 = vpop.f32.mrb[0].mxu0
    %v150 = vpop.f32.mrb[0].mxu0
    %151 = vdwg.mxu0
    %v152 = vadd.f32 %v46, %v147
    %153 = vst [vmem:[#allocation2] sm:$0xff] %v152
    // Predicated region
    $region26: #{mlp_layer_forward.2} parent=1 // pred_check
      %p154 = pneg %p41
    $region27: #{mlp_layer_forward.2} parent=1 // pred_check_branch
      %156 = sbr.rel (%p154) target = $region29
    $region28: #{mlp_layer_forward.2} parent=1 // pred_region
      %v157 = vld [vmem:[#allocation2] sm:$0xff]
      %v158 = vld [vmem:[#allocation5] sm:$0x1]
      %v160 = vlaneseq
      %v161 = vshrl.u32 %v160, 7
      %v162 = vsub.s32 0, %v161
      %v163 = vrot.slane %v158, %v162
      %v165 = vadd.f32 %v157, %v163
      %v166 = vmax.f32 %v165, 0.0
      %v167 = vpack.c.bf16 %v166, %v166
      %168 = vst [vmem:[%s3] sm:$0xf] %v167
    $region29: #{mlp_layer_forward.2} parent=1 // pred_fallthru
      _
    // Predicated region
    $region30: #{mlp_layer_forward.2} parent=1 // pred_check
      _
    $region31: #{mlp_layer_forward.2} parent=1 // pred_check_branch
      %170 = sbr.rel (0) target = $region33
    $region32: #{mlp_layer_forward.2} parent=1 // pred_region
      _
    $region33: #{mlp_layer_forward.2} parent=1 // pred_fallthru
      _
    // Predicated region
    $region34: #{mlp_layer_forward.2} parent=1 // pred_check
      _
    $region35: #{mlp_layer_forward.2} parent=1 // pred_check_branch
      %172 = sbr.rel (0) target = $region37
    $region36: #{mlp_layer_forward.2} parent=1 // pred_region
      _
    $region37: #{mlp_layer_forward.2} parent=1 // pred_fallthru
      _
    %173 = vsyncpa [#allocation4], 1
    %174 = vsyncpa [#allocation6], 1

</llo_original>
